<compile_context>
chip_gen: v7x
topology: tpu7x:2x2x1
jax: 0.10.0
libtpu: 0.0.40
codegen_flags: <defaults>
</compile_context>

<pallas_src>
import functools
import math

import jax
import jax.numpy as jnp
from jax import lax
from jax.experimental import pallas as pl
from jax.experimental.pallas import tpu as pltpu


# ----------------------------- tiling helpers -------------------------------


def _tile(dim, pref, align):
    """Largest `align`-multiple divisor of `dim` that is <= pref.

    Falls back to the full dim only if no aligned divisor exists (a full-dim
    block is always layout-legal)."""
    if dim <= pref:
        return dim
    t = (pref // align) * align
    while t >= align:
        if dim % t == 0:
            return t
        t -= align
    return dim


# ----------------------------- Pallas kernels -------------------------------


def linear_kernel(x_ref, w_ref, b_ref, o_ref, acc_ref):
    """One (tm, tn) output tile, bf16 MXU operands, f32 accumulation over K."""
    k = pl.program_id(2)

    @pl.when(k == 0)
    def _():
        acc_ref[...] = jnp.zeros(acc_ref.shape, acc_ref.dtype)

    acc_ref[...] += jnp.dot(
        x_ref[...].astype(jnp.bfloat16),
        w_ref[...].astype(jnp.bfloat16),
        preferred_element_type=jnp.float32,
    )

    @pl.when(k == pl.num_programs(2) - 1)
    def _():
        o_ref[...] = (acc_ref[...] + b_ref[...].astype(jnp.float32)).astype(
            o_ref.dtype
        )


def flash_attn_kernel(q_ref, kv_ref, o_ref, m_sc, l_sc, acc_sc, *,
                      n_heads, seg_length, scale):
    """Online-softmax attention for one (batch, q-tile, kv-tile) grid step.

    q_ref : (1, tq, C)   query tile
    kv_ref: (1, tk, 2C)  packed [K | V] tile
    o_ref : (1, tq, C)   output tile (written on the last kv step)
    m_sc  : (n_heads, tq, 1) running max      (f32 scratch)
    l_sc  : (n_heads, tq, 1) running denom    (f32 scratch)
    acc_sc: (tq, C)          running numerator (f32 scratch, lane-dense)
    """
    tq = q_ref.shape[1]
    tk = kv_ref.shape[1]
    C = q_ref.shape[2]
    hd = C // n_heads

    qi = pl.program_id(1)
    ki = pl.program_id(2)

    @pl.when(ki == 0)
    def _():
        m_sc[...] = jnp.full(m_sc.shape, -1e30, m_sc.dtype)
        l_sc[...] = jnp.zeros(l_sc.shape, l_sc.dtype)
        acc_sc[...] = jnp.zeros(acc_sc.shape, acc_sc.dtype)

    # Segment + causal mask for this (tq, tk) tile, from global row/col ids.
    # Segment rows (< seg_length) attend only within the segment; message rows
    # attend causally.  Finite -1e30 sentinel avoids inf/NaN in the softmax.
    rows = qi * tq + lax.broadcasted_iota(jnp.int32, (tq, tk), 0)
    cols = ki * tk + lax.broadcasted_iota(jnp.int32, (tq, tk), 1)
    allowed = jnp.where(rows < seg_length, cols < seg_length, cols <= rows)

    # Zero-cost ref views; per-head slices below load only what each head needs.
    q_blk = q_ref.at[0]    # (tq, C)
    kv_blk = kv_ref.at[0]  # (tk, 2C)

    # Static unrolled head loop (n_heads is small; per-head scratch writes
    # bound live ranges).
    for h in range(n_heads):
        lo, hi = h * hd, (h + 1) * hd
        # Fold 1/sqrt(hd) into q (f32 mul), then bf16 operands for the MXU.
        q_h = (q_blk[:, lo:hi] * scale).astype(jnp.bfloat16)        # (tq, hd)
        k_h = kv_blk[:, lo:hi].astype(jnp.bfloat16)                 # (tk, hd)
        v_h = kv_blk[:, C + lo:C + hi].astype(jnp.bfloat16)         # (tk, hd)

        # q @ k^T without an explicit transpose: contract the last dims.
        s = lax.dot_general(
            q_h, k_h, (((1,), (1,)), ((), ())),
            preferred_element_type=jnp.float32,
        )
        s = jnp.where(allowed, s, -1e30)

        m_prev = m_sc[h]                                            # (tq, 1)
        m_new = jnp.maximum(m_prev, jnp.max(s, axis=-1, keepdims=True))
        alpha = jnp.exp(m_prev - m_new)                             # f32
        p = jnp.exp(s - m_new)                                      # f32

        l_sc[h] = alpha * l_sc[h] + jnp.sum(p, axis=-1, keepdims=True)
        acc_sc[:, lo:hi] = alpha * acc_sc[:, lo:hi] + jnp.dot(
            p.astype(jnp.bfloat16), v_h, preferred_element_type=jnp.float32
        )
        m_sc[h] = m_new

    @pl.when(ki == pl.num_programs(2) - 1)
    def _():
        for h in range(n_heads):
            lo, hi = h * hd, (h + 1) * hd
            # EUP reciprocal keeps the VPU free for the scaling.
            acc_sc[:, lo:hi] = acc_sc[:, lo:hi] * pl.reciprocal(
                l_sc[h], approx=True
            )
        # Single lane-dense (tq, C) store.
        o_ref[0] = acc_sc[...].astype(o_ref.dtype)


# ------------------------------ JAX wrappers ---------------------------------


def pallas_linear(x2d, w, b, *, tm=512, tn=256, tk=512):
    """Tiled x @ W + b: x2d (M,K) f32, w (K,N) bf16, b (1,N) f32 -> (M,N)."""
    M, K = x2d.shape
    N = w.shape[1]
    tm = _tile(M, tm, 8)
    tn = _tile(N, tn, 128)
    tk = _tile(K, tk, 128)
    grid = (M // tm, N // tn, K // tk)
    return pl.pallas_call(
        linear_kernel,
        out_shape=jax.ShapeDtypeStruct((M, N), x2d.dtype),
        grid_spec=pltpu.PrefetchScalarGridSpec(
            num_scalar_prefetch=0,
            grid=grid,
            in_specs=[
                pl.BlockSpec((tm, tk), lambda i, j, k: (i, k)),
                pl.BlockSpec((tk, tn), lambda i, j, k: (k, j)),
                pl.BlockSpec((1, tn), lambda i, j, k: (0, j)),
            ],
            out_specs=pl.BlockSpec((tm, tn), lambda i, j, k: (i, j)),
            scratch_shapes=[pltpu.VMEM((tm, tn), jnp.float32)],
        ),
        compiler_params=pltpu.CompilerParams(
            dimension_semantics=("parallel", "parallel", "arbitrary")
        ),
    )(x2d, w, b)


def pallas_attention(q, kv, *, n_heads, seg_length, tq_pref=128, tk_pref=256):
    """q: (B,T,C), kv: (B,T,2C) packed [K|V] -> (B,T,C) attention output."""
    B, T, C = q.shape
    hd = C // n_heads
    tq = _tile(T, tq_pref, 8)
    tk = _tile(T, tk_pref, 8)
    grid = (B, T // tq, T // tk)

    kernel = functools.partial(
        flash_attn_kernel,
        n_heads=n_heads,
        seg_length=seg_length,
        scale=1.0 / math.sqrt(hd),
    )

    # Rough per-step VMEM need (double-buffered blocks + scratch + score tile);
    # raise the scoped-VMEM limit above the small v5e default, cap well under
    # v7x physical.
    est = (2 * tq * C * 4 + 2 * tk * 2 * C * 4 + 2 * tq * C * 4
           + tq * C * 4 + 2 * n_heads * max(tq, 8) * 128 * 4
           + 6 * tq * tk * 4)
    vmem_limit = int(min(64 * 1024 * 1024, max(32 * 1024 * 1024, 4 * est)))

    return pl.pallas_call(
        kernel,
        out_shape=jax.ShapeDtypeStruct((B, T, C), q.dtype),
        grid_spec=pltpu.PrefetchScalarGridSpec(
            num_scalar_prefetch=0,
            grid=grid,
            in_specs=[
                pl.BlockSpec((1, tq, C), lambda b, qi, ki: (b, qi, 0)),
                pl.BlockSpec((1, tk, 2 * C), lambda b, qi, ki: (b, ki, 0)),
            ],
            out_specs=pl.BlockSpec((1, tq, C), lambda b, qi, ki: (b, qi, 0)),
            scratch_shapes=[
                pltpu.VMEM((n_heads, tq, 1), jnp.float32),  # running max
                pltpu.VMEM((n_heads, tq, 1), jnp.float32),  # running denom
                pltpu.VMEM((tq, C), jnp.float32),           # running numerator
            ],
        ),
        compiler_params=pltpu.CompilerParams(
            dimension_semantics=("parallel", "parallel", "arbitrary"),
            vmem_limit_bytes=vmem_limit,
        ),
    )(q, kv)


def init_params(key, n_embed):
    """Deterministic params mimicking nn.Linear default init U(-1/sqrt(in), +).

    Weights stored pre-transposed (in, out) and in bf16 (MXU operand dtype);
    biases stay f32 (added to the f32 accumulator)."""
    k1, k2, k3, k4 = jax.random.split(key, 4)
    bound = 1.0 / math.sqrt(n_embed)
    w_attn = jax.random.uniform(
        k1, (n_embed, 3 * n_embed), jnp.float32, -bound, bound
    ).astype(jnp.bfloat16)
    b_attn = jax.random.uniform(k2, (1, 3 * n_embed), jnp.float32, -bound, bound)
    w_proj = jax.random.uniform(
        k3, (n_embed, n_embed), jnp.float32, -bound, bound
    ).astype(jnp.bfloat16)
    b_proj = jax.random.uniform(k4, (1, n_embed), jnp.float32, -bound, bound)
    return dict(w_attn=w_attn, b_attn=b_attn, w_proj=w_proj, b_proj=b_proj)


def causal_self_attention(x, params, *, n_heads, seg_length, message_length):
    B, T, C = x.shape
    del message_length  # T = seg_length + message_length already reflects it
    x2d = x.reshape(B * T, C)

    # c_attn, split at the weight level into Q and packed-KV halves so the
    # attention kernel gets layout-legal (..,C) / (..,2C) blocks for any C
    # without repacking activations in HBM.
    w_attn, b_attn = params["w_attn"], params["b_attn"]
    q = pallas_linear(x2d, w_attn[:, :C], b_attn[:, :C]).reshape(B, T, C)
    kv = pallas_linear(x2d, w_attn[:, C:], b_attn[:, C:]).reshape(B, T, 2 * C)

    # fused flash-style multi-head attention (attn_dropout is identity)
    y = pallas_attention(q, kv, n_heads=n_heads, seg_length=seg_length)

    # c_proj projection (resid_dropout is identity)
    out = pallas_linear(y.reshape(B * T, C), params["w_proj"], params["b_proj"])
    return out.reshape(B, T, C)


# --------------------------- pure-JAX reference ------------------------------


def reference(x, params, *, n_heads, seg_length):
    B, T, C = x.shape
    hd = C // n_heads
    w_attn = params["w_attn"].astype(jnp.float32)
    w_proj = params["w_proj"].astype(jnp.float32)
    qkv = x @ w_attn + params["b_attn"]
    q, k, v = jnp.split(qkv, 3, axis=-1)
    q = q.reshape(B, T, n_heads, hd).transpose(0, 2, 1, 3)
    k = k.reshape(B, T, n_heads, hd).transpose(0, 2, 1, 3)
    v = v.reshape(B, T, n_heads, hd).transpose(0, 2, 1, 3)
    att = (q @ jnp.swapaxes(k, -2, -1)) * (1.0 / math.sqrt(hd))
    idx = jnp.arange(T)
    rows, cols = idx[:, None], idx[None, :]
    allowed = jnp.where(rows < seg_length, cols < seg_length, cols <= rows)
    att = jnp.where(allowed[None, None], att, -jnp.inf)
    att = jax.nn.softmax(att, axis=-1)
    y = (att @ v).transpose(0, 2, 1, 3).reshape(B, T, C)
    return y @ w_proj + params["b_proj"]


# --------------------------------- main ---------------------------------------

if __name__ == "__main__":
    config = dict(
        n_embed=32,
        n_heads=4,
        dropout=0.0,
        seg_length=6,
        message_length=2,
        block_size=8,
    )
    B = 2
    T = config["seg_length"] + config["message_length"]  # 8

    key = jax.random.PRNGKey(0)
    kx, kp = jax.random.split(key)
    x = jax.random.normal(kx, (B, T, config["n_embed"]), jnp.float32)
    params = init_params(kp, config["n_embed"])

    out = causal_self_attention(
        x,
        params,
        n_heads=config["n_heads"],
        seg_length=config["seg_length"],
        message_length=config["message_length"],
    )
    jax.block_until_ready(out)
    assert out.shape == (B, T, config["n_embed"])

    ref = reference(x, params, n_heads=config["n_heads"],
                    seg_length=config["seg_length"])
    max_err = float(jnp.max(jnp.abs(out - ref)))
    # Loose tolerance: bf16 MXU operands + approx reciprocal vs f32 reference.
    assert max_err < 0.1, f"max abs error {max_err}"

    print("KERNEL_OK")
</pallas_src>

<mosaic_0001>
module attributes {stable_mosaic.version = 11 : i64} {
  func.func @linear_kernel(%arg0: i32, %arg1: i32, %arg2: i32, %arg3: memref<16x32xf32, #tpu.memory_space<vmem>>, %arg4: memref<32x32xbf16, #tpu.memory_space<vmem>>, %arg5: memref<1x32xf32, #tpu.memory_space<vmem>>, %arg6: memref<16x32xf32, #tpu.memory_space<vmem>>, %arg7: memref<16x32xf32, #tpu.memory_space<vmem>>) attributes {dimension_semantics = [#tpu.dimension_semantics<parallel>, #tpu.dimension_semantics<parallel>, #tpu.dimension_semantics<arbitrary>], iteration_bounds = array<i64: 1, 1, 1>, scalar_prefetch = 0 : i64, scratch_operands = 1 : i64, tpu.core_type = #tpu.core_type<tc>, window_params = [{transform_indices = @transform_0, window_bounds = array<i64: 16, 32>}, {transform_indices = @transform_1, window_bounds = array<i64: 32, 32>}, {transform_indices = @transform_2, window_bounds = array<i64: 1, 32>}, {transform_indices = @transform_3, window_bounds = array<i64: 16, 32>}]} {
    %c0_i32 = arith.constant 0 : i32
    %0 = arith.cmpi eq, %arg2, %c0_i32 : i32
    %1 = arith.extui %0 : i1 to i32
    %c0_i32_0 = arith.constant 0 : i32
    %2 = arith.cmpi ne, %1, %c0_i32_0 : i32
    scf.if %2 {
      %cst_10 = arith.constant 0.000000e+00 : f32
      %13 = vector.broadcast %cst_10 : f32 to vector<16x32xf32>
      %c0_11 = arith.constant 0 : index
      %c0_12 = arith.constant 0 : index
      %14 = vector.load %arg7[%c0_11, %c0_12] : memref<16x32xf32, #tpu.memory_space<vmem>>, vector<16x32xf32>
      tpu.vector_store %arg7[%c0_11, %c0_12], %13 {strides = array<i32>} : memref<16x32xf32, #tpu.memory_space<vmem>>, vector<16x32xf32>,
    } else {
    }
    %c0 = arith.constant 0 : index
    %c0_1 = arith.constant 0 : index
    %3 = vector.load %arg7[%c0, %c0_1] : memref<16x32xf32, #tpu.memory_space<vmem>>, vector<16x32xf32>
    %c0_2 = arith.constant 0 : index
    %c0_3 = arith.constant 0 : index
    %4 = vector.load %arg3[%c0_2, %c0_3] : memref<16x32xf32, #tpu.memory_space<vmem>>, vector<16x32xf32>
    %5 = arith.truncf %4 : vector<16x32xf32> to vector<16x32xbf16>
    %c0_4 = arith.constant 0 : index
    %c0_5 = arith.constant 0 : index
    %6 = vector.load %arg4[%c0_4, %c0_5] : memref<32x32xbf16, #tpu.memory_space<vmem>>, vector<32x32xbf16>
    %cst = arith.constant dense<0.000000e+00> : vector<16x32xf32>
    %7 = tpu.matmul %5, %6, %cst {dimension_numbers = #tpu.dot_dimension_numbers<[1], [0], [0], [1], [0, 0, 1, 1], [], []>} : vector<16x32xbf16>, vector<32x32xbf16>, vector<16x32xf32> -> vector<16x32xf32>
    %8 = arith.addf %3, %7 : vector<16x32xf32>
    %c0_6 = arith.constant 0 : index
    %c0_7 = arith.constant 0 : index
    %9 = vector.load %arg7[%c0_6, %c0_7] : memref<16x32xf32, #tpu.memory_space<vmem>>, vector<16x32xf32>
    tpu.vector_store %arg7[%c0_6, %c0_7], %8 {strides = array<i32>} : memref<16x32xf32, #tpu.memory_space<vmem>>, vector<16x32xf32>,
    %c0_i32_8 = arith.constant 0 : i32
    %10 = arith.cmpi eq, %arg2, %c0_i32_8 : i32
    %11 = arith.extui %10 : i1 to i32
    %c0_i32_9 = arith.constant 0 : i32
    %12 = arith.cmpi ne, %11, %c0_i32_9 : i32
    scf.if %12 {
      %c0_10 = arith.constant 0 : index
      %c0_11 = arith.constant 0 : index
      %13 = vector.load %arg7[%c0_10, %c0_11] : memref<16x32xf32, #tpu.memory_space<vmem>>, vector<16x32xf32>
      %c0_12 = arith.constant 0 : index
      %c0_13 = arith.constant 0 : index
      %14 = vector.load %arg5[%c0_12, %c0_13] : memref<1x32xf32, #tpu.memory_space<vmem>>, vector<1x32xf32>
      %15 = vector.broadcast %14 : vector<1x32xf32> to vector<16x32xf32>
      %16 = arith.addf %13, %15 : vector<16x32xf32>
      %c0_14 = arith.constant 0 : index
      %c0_15 = arith.constant 0 : index
      %17 = vector.load %arg6[%c0_14, %c0_15] : memref<16x32xf32, #tpu.memory_space<vmem>>, vector<16x32xf32>
      tpu.vector_store %arg6[%c0_14, %c0_15], %16 {strides = array<i32>} : memref<16x32xf32, #tpu.memory_space<vmem>>, vector<16x32xf32>,
    } else {
    }
    return
  }
  func.func @transform_0(%arg0: i32, %arg1: i32, %arg2: i32) -> (i32, i32) {
    %c0_i32 = arith.constant 0 : i32
    return %arg0, %arg2 : i32, i32
  }
  func.func @transform_1(%arg0: i32, %arg1: i32, %arg2: i32) -> (i32, i32) {
    %c0_i32 = arith.constant 0 : i32
    return %arg2, %arg1 : i32, i32
  }
  func.func @transform_2(%arg0: i32, %arg1: i32, %arg2: i32) -> (i32, i32) {
    %c0_i32 = arith.constant 0 : i32
    %c0_i32_0 = arith.constant 0 : i32
    return %c0_i32, %arg1 : i32, i32
  }
  func.func @transform_3(%arg0: i32, %arg1: i32, %arg2: i32) -> (i32, i32) {
    %c0_i32 = arith.constant 0 : i32
    return %arg0, %arg1 : i32, i32
  }
}

</mosaic_0001>

<llo_original>
// kernel: tpu_custom_call.1
$region0: #{tpu_custom_call.1}
  #allocation0 [shape = 'u32[]', space=smem, size = 0x4, offset = 0x4, fixed_abs, tag = 'smem constant byte address 0x4 - core index']
  #allocation1 [shape = 'u32[144,128]{1,0:T(1,128)}', space=vmem, size = 0x12000, scoped, tag = 'internal scratch']
  #allocation2 [shape = 'f32[16,32]{1,0:T(8,128)}', space=vmem, size = 0x2000, scoped, tag = 'scratch operand']
  %s0 = inlined_call_operand.hbm [shape: f32[16,32], index: 0, kind: input, shape index: {}]
  %s1 = inlined_call_operand.hbm [shape: bf16[32,32], index: 1, kind: input, shape index: {}]
  %s2 = inlined_call_operand.vmem [shape: f32[1,32], index: 2, kind: input, shape index: {}]
  %s3 = inlined_call_operand.hbm [shape: f32[16,32], index: 3, kind: output, shape index: {}]
  %s4 = sld [smem:[#allocation0]]
  $region38: #{tpu_custom_call.1} parent=0
    _
  %s6 = ssub.s32 1, %s4
  %s7 = scalar_select 0, %s6, %s4
  $region1: #{tpu_custom_call.1} parent=0
    #allocation3 [shape = 'u8[8192]{0}', space=vmem, size = 0x2000, scoped, tag = 'input window, operand 0, single buffered']
    #allocation4 [shape = 's32[1]{0}', space=sflag, size = 0x4, scoped, tag = 'scoped memory for tpu_custom_call.1']
    #allocation5 [shape = 's32[1]{0}', space=sflag, size = 0x4, scoped, tag = 'scoped memory for tpu_custom_call.1']
    #allocation6 [shape = 'u8[8192]{0}', space=vmem, size = 0x2000, scoped, tag = 'input window, operand 1, single buffered']
    #allocation7 [shape = 's32[1]{0}', space=sflag, size = 0x4, scoped, tag = 'scoped memory for tpu_custom_call.1']
    #allocation8 [shape = 'u8[8192]{0}', space=vmem, size = 0x2000, scoped, tag = 'output window, operand 0, single buffered']
    %8 = vsyncpa [#allocation4], 0
    %9 = vsyncpa [#allocation7], 0
    %10 = vsyncpa [#allocation5], 0
    // Predicated region
    $region2: #{tpu_custom_call.1} parent=1 // pred_check
      _
    $region3: #{tpu_custom_call.1} parent=1 // pred_check_branch
      %12 = sbr.rel (0) target = $region5
    $region4: #{tpu_custom_call.1} parent=1 // pred_region
      %s14 = ssub.s32 256, 256
      %15 = vsyncadd [#allocation4], %s14
      %s16 = sshll.u32 [#allocation3], 4
      %s17 = int_to_ptr.vmem [resolvable:$true] %s16
      %22 = dma.hbm_to_vmem [thread:$0]  %s0, 256, %s17, [#allocation4], 128, 128, 8
    $region5: #{tpu_custom_call.1} parent=1 // pred_fallthru
      _
    // Predicated region
    $region6: #{tpu_custom_call.1} parent=1 // pred_check
      _
    $region7: #{tpu_custom_call.1} parent=1 // pred_check_branch
      %24 = sbr.rel (0) target = $region9
    $region8: #{tpu_custom_call.1} parent=1 // pred_region
      %s26 = ssub.s32 256, 256
      %27 = vsyncadd [#allocation7], %s26
      %s28 = sshll.u32 [#allocation6], 4
      %s29 = int_to_ptr.vmem [resolvable:$true] %s28
      %34 = dma.hbm_to_vmem [thread:$0]  %s1, 256, %s29, [#allocation7], 64, 64, 4
    $region9: #{tpu_custom_call.1} parent=1 // pred_fallthru
      _
    // Predicated region
    $region10: #{tpu_custom_call.1} parent=1 // pred_check
      _
    $region11: #{tpu_custom_call.1} parent=1 // pred_check_branch
      %36 = sbr.rel (0) target = $region13
    $region12: #{tpu_custom_call.1} parent=1 // pred_region
      _
    $region13: #{tpu_custom_call.1} parent=1 // pred_fallthru
      _
    // Predicated region
    $region14: #{tpu_custom_call.1} parent=1 // pred_check
      _
    $region15: #{tpu_custom_call.1} parent=1 // pred_check_branch
      %38 = sbr.rel (0) target = $region17
    $region16: #{tpu_custom_call.1} parent=1 // pred_region
      %39 = dma.done [#allocation4], 256
    $region17: #{tpu_custom_call.1} parent=1 // pred_fallthru
      _
    // Predicated region
    $region18: #{tpu_custom_call.1} parent=1 // pred_check
      _
    $region19: #{tpu_custom_call.1} parent=1 // pred_check_branch
      %41 = sbr.rel (0) target = $region21
    $region20: #{tpu_custom_call.1} parent=1 // pred_region
      %42 = dma.done [#allocation7], 256
    $region21: #{tpu_custom_call.1} parent=1 // pred_fallthru
      _
    %p44 = scmp.eq.s32.totalorder 0, 0
    // Predicated region
    $region22: #{tpu_custom_call.1} parent=1 // pred_check
      %p45 = pneg %p44
    $region23: #{tpu_custom_call.1} parent=1 // pred_check_branch
      %47 = sbr.rel (%p45) target = $region25
    $region24: #{tpu_custom_call.1} parent=1 // pred_region
      %vm48 = vcmask 261120
      %49 = vst.msk [vmem:[#allocation2] sm:$0xff] %vm48, 0.0
      %50 = vst.msk [vmem:[#allocation2 + $0x8] sm:$0xff] %vm48, 0.0
    $region25: #{tpu_custom_call.1} parent=1 // pred_fallthru
      _
    %v51 = vld [vmem:[#allocation2] sm:$0xff]
    %v52 = vld [vmem:[#allocation2 + $0x8] sm:$0xff]
    %v53 = vld [vmem:[#allocation3] sm:$0xff]
    %v54 = vld [vmem:[#allocation3 + $0x8] sm:$0xff]
    %v55 = vpack.c.bf16 %v54, %v53
    %v56 = vld [vmem:[#allocation6] sm:$0xf]
    %v57 = vld [vmem:[#allocation6 + $0x4] sm:$0xf]
    %v58 = vld [vmem:[#allocation6 + $0x8] sm:$0xf]
    %v59 = vld [vmem:[#allocation6 + $0xc] sm:$0xf]
    %v64 = vunpack.c.l.b16 %v56
    %v65 = vunpack.c.l.b16 %v57
    %v66 = vunpack.c.l.b16 %v58
    %v67 = vunpack.c.l.b16 %v59
    %v68 = vpack.c.b16 %v65, %v64
    %v69 = vpack.c.b16 %v67, %v66
    %vm72 = vcmask 261120
    %v74 = vsel %vm72, %v55, 0
    %76 = vmatprep.subr.bf16.mxu0 0
    %77 = vmatpush1.bf16.msra.mxu0 %v68
    %78 = vmatprep.subr.bf16.mxu0 0
    %79 = vmatpush1.bf16.msra.mxu0 %v69
    %80 = vmatprep.subr.bf16.mxu0 0
    %81 = vmatpush1.bf16.msra.mxu0 0
    %82 = vmatprep.subr.bf16.mxu0 0
    %83 = vmatpush1.bf16.msra.mxu0 0
    %84 = vmatprep.subr.bf16.mxu0 0
    %85 = vmatpush1.bf16.msra.mxu0 0
    %86 = vmatprep.subr.bf16.mxu0 0
    %87 = vmatpush1.bf16.msra.mxu0 0
    %88 = vmatprep.subr.bf16.mxu0 0
    %89 = vmatpush1.bf16.msra.mxu0 0
    %90 = vmatprep.subr.bf16.mxu0 0
    %91 = vmatpush1.bf16.msra.mxu0 0
    %92 = vmatprep.subr.bf16.mxu0 0
    %93 = vmatpush1.bf16.msra.mxu0 0
    %94 = vmatprep.subr.bf16.mxu0 0
    %95 = vmatpush1.bf16.msra.mxu0 0
    %96 = vmatprep.subr.bf16.mxu0 0
    %97 = vmatpush1.bf16.msra.mxu0 0
    %98 = vmatprep.subr.bf16.mxu0 0
    %99 = vmatpush1.bf16.msra.mxu0 0
    %100 = vmatprep.subr.bf16.mxu0 0
    %101 = vmatpush1.bf16.msra.mxu0 0
    %102 = vmatprep.subr.bf16.mxu0 0
    %103 = vmatpush1.bf16.msra.mxu0 0
    %104 = vmatprep.subr.bf16.mxu0 0
    %105 = vmatpush1.bf16.msra.mxu0 0
    %106 = vmatprep.subr.bf16.mxu0 0
    %107 = vmatpush1.bf16.msra.mxu0 0
    %108 = vmatprep.mubr.bf16.mxu0 0
    %109 = vmatmul.mubr.bf16.gmra.mrb[0].mxu0 %v74
    %v110 = vpop.f32.mrb[0].mxu0
    %v111 = vadd.f32 0.0, %v110
    %v112 = vpop.f32.mrb[0].mxu0
    %v113 = vpop.f32.mrb[0].mxu0
    %v114 = vadd.f32 0.0, %v113
    %v115 = vpop.f32.mrb[0].mxu0
    %116 = vdwg.mxu0
    %v117 = vadd.f32 %v51, %v111
    %v118 = vadd.f32 %v52, %v114
    %119 = vst.msk [vmem:[#allocation2] sm:$0xff] %vm72, %v117
    %120 = vst.msk [vmem:[#allocation2 + $0x8] sm:$0xff] %vm72, %v118
    // Predicated region
    $region26: #{tpu_custom_call.1} parent=1 // pred_check
      %p121 = pneg %p44
    $region27: #{tpu_custom_call.1} parent=1 // pred_check_branch
      %123 = sbr.rel (%p121) target = $region29
    $region28: #{tpu_custom_call.1} parent=1 // pred_region
      %v124 = vld [vmem:[#allocation2] sm:$0xff]
      %v125 = vld [vmem:[#allocation2 + $0x8] sm:$0xff]
      %v126 = vld [vmem:[%s2] sm:$0x1]
      %v128 = vlaneseq
      %v129 = vshrl.u32 %v128, 7
      %v130 = vsub.s32 0, %v129
      %v131 = vrot.slane %v126, %v130
      %v133 = vadd.f32 %v124, %v131
      %v134 = vadd.f32 %v125, %v131
      %135 = vst.msk [vmem:[#allocation8] sm:$0xff] %vm72, %v133
      %136 = vst.msk [vmem:[#allocation8 + $0x8] sm:$0xff] %vm72, %v134
    $region29: #{tpu_custom_call.1} parent=1 // pred_fallthru
      _
    // Predicated region
    $region30: #{tpu_custom_call.1} parent=1 // pred_check
      _
    $region31: #{tpu_custom_call.1} parent=1 // pred_check_branch
      %138 = sbr.rel (0) target = $region33
    $region32: #{tpu_custom_call.1} parent=1 // pred_region
      %s140 = ssub.s32 256, 256
      %141 = vsyncadd [#allocation5], %s140
      %s142 = sshll.u32 [#allocation8], 4
      %s143 = int_to_ptr.vmem [resolvable:$true] %s142
      %148 = dma.vmem_to_hbm [thread:$0]  %s143, 256, %s3, [#allocation5], 128, 128, 8
    $region33: #{tpu_custom_call.1} parent=1 // pred_fallthru
      _
    // Predicated region
    $region34: #{tpu_custom_call.1} parent=1 // pred_check
      _
    $region35: #{tpu_custom_call.1} parent=1 // pred_check_branch
      %150 = sbr.rel (0) target = $region37
    $region36: #{tpu_custom_call.1} parent=1 // pred_region
      %151 = dma.done [#allocation5], 256
    $region37: #{tpu_custom_call.1} parent=1 // pred_fallthru
      _
    %152 = vsyncpa [#allocation4], 1
    %153 = vsyncpa [#allocation7], 1
    %154 = vsyncpa [#allocation5], 1

</llo_original>
